<compile_context>
chip_gen: v6e
topology: v6e:2x2x1
jax: 0.10.0
libtpu: 0.0.40
codegen_flags: <defaults>
</compile_context>

<pallas_src>
import math
from functools import partial

import jax
import jax.numpy as jnp
from jax import lax
from jax.experimental import pallas as pl
from jax.experimental.pallas import tpu as pltpu

_UNROLL_MAX = 64  # static-unroll limit for the per-y interleave stores


# ---------------------------------------------------------------------------
# Kernels
# ---------------------------------------------------------------------------
def _flat_kernel(C, ch_tot, ty, slab_ref, x_ref, out_ref):
    """Lane-dense path (C+CH not a multiple of 128).

    slab_ref: (tx, ty*ch_tot)  periodic row: [0]*C + cos(...)  (output dtype)
    x_ref:    (tx, ty*C)       flattened input tile
    out_ref:  (tx, ty*ch_tot)  flattened output tile
    """
    # 1) One dense, full-width store of the positional slab (the C "x" lanes
    #    of every group are zero padding and get overwritten below).
    out_ref[...] = slab_ref[...]

    # 2) Interleave the input channels: for each y-group overwrite its first
    #    C lanes.  Static slices -> masked vst + lane rotation (XLU), hidden
    #    under the HBM-bound DMA stream.
    if ty <= _UNROLL_MAX:
        for y in range(ty):
            out_ref[:, y * ch_tot:y * ch_tot + C] = x_ref[:, y * C:y * C + C]
    else:
        # TODO(synk): batch several y-groups per store (roll+select) if the
        # bundle dump ever shows the vst slot binding for very large Y tiles.
        def body(y, carry):
            out_ref[:, pl.ds(y * ch_tot, C)] = x_ref[:, pl.ds(y * C, C)]
            return carry
        lax.fori_loop(0, ty, body, 0)


def _wide_kernel(C, disjoint, emb_ref, x_ref, out_ref):
    """Already-lane-dense path (C+CH multiple of 128); 4-D blocks.

    emb_ref: (X, ch_tot) resident cos table ([0]*C + cos row)
    x_ref:   (tx, ty, C)
    out_ref: (tx, ty, ch_tot)
    """
    tx, ty, ch_tot = out_ref.shape
    x0 = pl.multiple_of(pl.program_id(1) * tx, 8)
    emb_blk = emb_ref[pl.ds(x0, tx), :]                       # (tx, ch_tot)
    if disjoint:   # C % 128 == 0: two disjoint, aligned stores (no rewrite)
        out_ref[:, :, C:] = jnp.broadcast_to(
            emb_blk[:, None, C:], (tx, ty, ch_tot - C))
    else:
        out_ref[...] = jnp.broadcast_to(emb_blk[:, None, :], (tx, ty, ch_tot))
    out_ref[:, :, :C] = x_ref[...]


# ---------------------------------------------------------------------------
# Tiling / VMEM helpers
# ---------------------------------------------------------------------------
def _divisors(n):
    return sorted(d for d in range(1, n + 1) if n % d == 0)


def _vmem_params():
    """Generation-aware (v5e/v6e: 128 MiB, v7x: 64 MiB) VMEM budget & limit."""
    cap = 64 * 1024 * 1024  # conservative fallback (v7x-sized)
    try:
        info = pltpu.get_tpu_info()
        cap = int(getattr(info, "vmem_capacity_bytes", cap) or cap)
    except Exception:
        pass
    budget = min(3 * cap // 8, 48 * 1024 * 1024)   # 48 MiB v5e/v6e, 24 MiB v7x
    limit = min(3 * cap // 4, 110 * 1024 * 1024)   # 96 MiB v5e/v6e, 48 MiB v7x
    return budget, limit


def _pick_tiles(B, X, Y, C, ch_tot, itemsize, budget, flat):
    """Pick (tx, ty): largest blocks that fit the budget while keeping
    >=4 (and even) total grid steps so the pipeline overlaps / megacore splits."""
    sub = max(8, 32 // itemsize)                       # packed sublane count
    rup = lambda v, m: ((v + m - 1) // m) * m

    tx_cands = [d for d in _divisors(X) if d == X or d % 8 == 0]
    if flat:
        ty_cands = [d for d in _divisors(Y)
                    if d == Y or ((d * C) % 128 == 0 and (d * ch_tot) % 128 == 0)]
    else:
        ty_cands = [d for d in _divisors(Y) if d == Y or d % 8 == 0]

    best_key, best = None, (tx_cands[0], ty_cands[0])
    for tx in tx_cands:
        for ty in ty_cands:
            if flat:
                rows = rup(tx, sub)
                fp = 2 * rows * (rup(ty * C, 128)
                                 + 2 * rup(ty * ch_tot, 128)) * itemsize
            else:
                fp = (2 * tx * rup(ty, sub)
                      * (rup(C, 128) + rup(ch_tot, 128)) * itemsize
                      + 2 * rup(X, sub) * rup(ch_tot, 128) * itemsize)
            steps = B * (X // tx) * (Y // ty)
            if steps >= 4 and steps % 2 == 0:
                cls = 0
            elif steps >= 4:
                cls = 1
            elif steps >= 2:
                cls = 2
            else:
                cls = 3
            if fp <= budget:
                key = (0, cls, -(tx * ty), -ty, -tx)
            else:            # nothing fits -> smallest footprint wins
                key = (1, fp, 0, 0, 0)
            if best_key is None or key < best_key:
                best_key, best = key, (tx, ty)
    return best


# ---------------------------------------------------------------------------
# Wrapper
# ---------------------------------------------------------------------------
def positional_encoding_2d(x, channels):
    """x: (B, X, Y, C) -> (B, X, Y, C + channels)."""
    B, X, Y, C = x.shape
    ch_tot = C + channels
    dt = x.dtype
    itemsize = jnp.dtype(dt).itemsize
    budget, vmem_limit = _vmem_params()

    # Tiny cos table, computed once in the wrapper (exact module semantics:
    # inv_freq = pi * 2**k), left-padded with C zero columns and pre-cast so
    # the kernel does zero arithmetic.
    inv_freq = math.pi * jnp.power(2.0, jnp.arange(channels, dtype=jnp.float32))
    pos_x = jnp.arange(X, dtype=jnp.float32) / X
    emb = jnp.cos(pos_x[:, None] * inv_freq[None, :])           # (X, CH) f32
    emb_pad = jnp.pad(emb, ((0, 0), (C, 0))).astype(dt)         # (X, C+CH)

    cparams = pltpu.CompilerParams(
        dimension_semantics=("parallel", "parallel", "parallel"),
        vmem_limit_bytes=vmem_limit)

    if ch_tot % 128 == 0:
        # Channel axis already lane-dense -> keep the 4-D layout.
        tx, ty = _pick_tiles(B, X, Y, C, ch_tot, itemsize, budget, flat=False)
        grid = (B, X // tx, Y // ty)
        return pl.pallas_call(
            partial(_wide_kernel, C, C % 128 == 0),
            grid=grid,
            in_specs=[
                pl.BlockSpec((X, ch_tot), lambda b, i, j: (0, 0)),  # resident
                pl.BlockSpec((None, tx, ty, C), lambda b, i, j: (b, i, j, 0)),
            ],
            out_specs=pl.BlockSpec((None, tx, ty, ch_tot),
                                   lambda b, i, j: (b, i, j, 0)),
            out_shape=jax.ShapeDtypeStruct((B, X, Y, ch_tot), dt),
            compiler_params=cparams,
        )(emb_pad, x)

    # ---- Lane-dense flattened path (C+CH below / not a multiple of 128) ----
    tx, ty = _pick_tiles(B, X, Y, C, ch_tot, itemsize, budget, flat=True)
    grid = (B, X // tx, Y // ty)

    # Periodic positional slab, widened to the output-block lane width in the
    # wrapper (plain XLA).  Its block index ignores (b, j), so it is only
    # re-fetched when the x-tile changes (total extra read = out_bytes / nYtiles).
    slab = jnp.tile(emb_pad, (1, ty))                 # (X, ty*(C+CH))
    x_flat = x.reshape(B, X, Y * C)                   # trailing dims -> lanes

    out_flat = pl.pallas_call(
        partial(_flat_kernel, C, ch_tot, ty),
        grid=grid,
        in_specs=[
            pl.BlockSpec((tx, ty * ch_tot), lambda b, i, j: (i, 0)),
            pl.BlockSpec((None, tx, ty * C), lambda b, i, j: (b, i, j)),
        ],
        out_specs=pl.BlockSpec((None, tx, ty * ch_tot),
                               lambda b, i, j: (b, i, j)),
        out_shape=jax.ShapeDtypeStruct((B, X, Y * ch_tot), dt),
        compiler_params=cparams,
    )(slab, x_flat)

    # Restore the module's 4-D contract.
    return out_flat.reshape(B, X, Y, ch_tot)


def positional_encoding_2d_ref(x, channels):
    """Pure-JAX reference mirroring the PyTorch forward."""
    B, X, Y, C = x.shape
    inv_freq = math.pi * jnp.power(2.0, jnp.arange(channels, dtype=jnp.float32))
    pos_x = jnp.arange(X, dtype=jnp.float32) / X
    sin_inp_x = jnp.einsum('i,j->ij', pos_x, inv_freq)            # (X, CH)
    emb_x = jnp.cos(sin_inp_x)[None, :, None, :]                  # (1, X, 1, CH)
    emb_x = jnp.broadcast_to(emb_x, (B, X, Y, channels)).astype(x.dtype)
    return jnp.concatenate([x, emb_x], axis=-1)


if __name__ == "__main__":
    key = jax.random.PRNGKey(0)
    B, X, Y, C = 2, 16, 16, 4
    CHANNELS = 8   # module hyper-parameter (size of the positional embedding)

    x = jax.random.normal(key, (B, X, Y, C), dtype=jnp.float32)

    out = positional_encoding_2d(x, CHANNELS)
    out = jax.block_until_ready(out)

    ref = positional_encoding_2d_ref(x, CHANNELS)
    assert out.shape == (B, X, Y, C + CHANNELS), out.shape
    assert jnp.allclose(out, ref, atol=1e-5, rtol=1e-5), \
        float(jnp.max(jnp.abs(out - ref)))

    print("KERNEL_OK")
</pallas_src>

<mosaic_0001>
module attributes {stable_mosaic.version = 11 : i64} {
  func.func @_flat_kernel(%arg0: i32, %arg1: i32, %arg2: i32, %arg3: memref<8x192xf32, #tpu.memory_space<vmem>>, %arg4: memref<1x8x64xf32, #tpu.memory_space<vmem>>, %arg5: memref<1x8x192xf32, #tpu.memory_space<vmem>>) attributes {dimension_semantics = [#tpu.dimension_semantics<parallel>, #tpu.dimension_semantics<parallel>, #tpu.dimension_semantics<parallel>], iteration_bounds = array<i64: 2, 2, 1>, scalar_prefetch = 0 : i64, scratch_operands = 0 : i64, tpu.core_type = #tpu.core_type<tc>, window_params = [{transform_indices = @transform_0, window_bounds = array<i64: 8, 192>}, {transform_indices = @transform_1, window_bounds = array<i64: 1, 8, 64>}, {transform_indices = @transform_2, window_bounds = array<i64: 1, 8, 192>}]} {
    %c0 = arith.constant 0 : index
    %c0_0 = arith.constant 0 : index
    %0 = vector.load %arg3[%c0, %c0_0] : memref<8x192xf32, #tpu.memory_space<vmem>>, vector<8x192xf32>
    %c0_1 = arith.constant 0 : index
    %c0_2 = arith.constant 0 : index
    %c0_3 = arith.constant 0 : index
    %1 = vector.load %arg5[%c0_1, %c0_2, %c0_3] : memref<1x8x192xf32, #tpu.memory_space<vmem>>, vector<1x8x192xf32>
    %2 = vector.shape_cast %1 : vector<1x8x192xf32> to vector<8x192xf32>
    %3 = vector.shape_cast %0 : vector<8x192xf32> to vector<1x8x192xf32>
    tpu.vector_store %arg5[%c0_1, %c0_2, %c0_3], %3 {strides = array<i32>} : memref<1x8x192xf32, #tpu.memory_space<vmem>>, vector<1x8x192xf32>,
    %c0_4 = arith.constant 0 : index
    %c0_5 = arith.constant 0 : index
    %c0_6 = arith.constant 0 : index
    %4 = vector.load %arg4[%c0_4, %c0_5, %c0_6] : memref<1x8x64xf32, #tpu.memory_space<vmem>>, vector<1x8x4xf32>
    %5 = vector.shape_cast %4 : vector<1x8x4xf32> to vector<8x4xf32>
    %c0_7 = arith.constant 0 : index
    %c0_8 = arith.constant 0 : index
    %c0_9 = arith.constant 0 : index
    %6 = vector.load %arg5[%c0_7, %c0_8, %c0_9] : memref<1x8x192xf32, #tpu.memory_space<vmem>>, vector<1x8x4xf32>
    %7 = vector.shape_cast %6 : vector<1x8x4xf32> to vector<8x4xf32>
    %8 = vector.shape_cast %5 : vector<8x4xf32> to vector<1x8x4xf32>
    tpu.vector_store %arg5[%c0_7, %c0_8, %c0_9], %8 {strides = array<i32>} : memref<1x8x192xf32, #tpu.memory_space<vmem>>, vector<1x8x4xf32>,
    %c0_10 = arith.constant 0 : index
    %c0_11 = arith.constant 0 : index
    %c4 = arith.constant 4 : index
    %9 = vector.load %arg4[%c0_10, %c0_11, %c4] : memref<1x8x64xf32, #tpu.memory_space<vmem>>, vector<1x8x4xf32>
    %10 = vector.shape_cast %9 : vector<1x8x4xf32> to vector<8x4xf32>
    %c0_12 = arith.constant 0 : index
    %c0_13 = arith.constant 0 : index
    %c12 = arith.constant 12 : index
    %11 = vector.load %arg5[%c0_12, %c0_13, %c12] : memref<1x8x192xf32, #tpu.memory_space<vmem>>, vector<1x8x4xf32>
    %12 = vector.shape_cast %11 : vector<1x8x4xf32> to vector<8x4xf32>
    %13 = vector.shape_cast %10 : vector<8x4xf32> to vector<1x8x4xf32>
    tpu.vector_store %arg5[%c0_12, %c0_13, %c12], %13 {strides = array<i32>} : memref<1x8x192xf32, #tpu.memory_space<vmem>>, vector<1x8x4xf32>,
    %c0_14 = arith.constant 0 : index
    %c0_15 = arith.constant 0 : index
    %c8 = arith.constant 8 : index
    %14 = vector.load %arg4[%c0_14, %c0_15, %c8] : memref<1x8x64xf32, #tpu.memory_space<vmem>>, vector<1x8x4xf32>
    %15 = vector.shape_cast %14 : vector<1x8x4xf32> to vector<8x4xf32>
    %c0_16 = arith.constant 0 : index
    %c0_17 = arith.constant 0 : index
    %c24 = arith.constant 24 : index
    %16 = vector.load %arg5[%c0_16, %c0_17, %c24] : memref<1x8x192xf32, #tpu.memory_space<vmem>>, vector<1x8x4xf32>
    %17 = vector.shape_cast %16 : vector<1x8x4xf32> to vector<8x4xf32>
    %18 = vector.shape_cast %15 : vector<8x4xf32> to vector<1x8x4xf32>
    tpu.vector_store %arg5[%c0_16, %c0_17, %c24], %18 {strides = array<i32>} : memref<1x8x192xf32, #tpu.memory_space<vmem>>, vector<1x8x4xf32>,
    %c0_18 = arith.constant 0 : index
    %c0_19 = arith.constant 0 : index
    %c12_20 = arith.constant 12 : index
    %19 = vector.load %arg4[%c0_18, %c0_19, %c12_20] : memref<1x8x64xf32, #tpu.memory_space<vmem>>, vector<1x8x4xf32>
    %20 = vector.shape_cast %19 : vector<1x8x4xf32> to vector<8x4xf32>
    %c0_21 = arith.constant 0 : index
    %c0_22 = arith.constant 0 : index
    %c36 = arith.constant 36 : index
    %21 = vector.load %arg5[%c0_21, %c0_22, %c36] : memref<1x8x192xf32, #tpu.memory_space<vmem>>, vector<1x8x4xf32>
    %22 = vector.shape_cast %21 : vector<1x8x4xf32> to vector<8x4xf32>
    %23 = vector.shape_cast %20 : vector<8x4xf32> to vector<1x8x4xf32>
    tpu.vector_store %arg5[%c0_21, %c0_22, %c36], %23 {strides = array<i32>} : memref<1x8x192xf32, #tpu.memory_space<vmem>>, vector<1x8x4xf32>,
    %c0_23 = arith.constant 0 : index
    %c0_24 = arith.constant 0 : index
    %c16 = arith.constant 16 : index
    %24 = vector.load %arg4[%c0_23, %c0_24, %c16] : memref<1x8x64xf32, #tpu.memory_space<vmem>>, vector<1x8x4xf32>
    %25 = vector.shape_cast %24 : vector<1x8x4xf32> to vector<8x4xf32>
    %c0_25 = arith.constant 0 : index
    %c0_26 = arith.constant 0 : index
    %c48 = arith.constant 48 : index
    %26 = vector.load %arg5[%c0_25, %c0_26, %c48] : memref<1x8x192xf32, #tpu.memory_space<vmem>>, vector<1x8x4xf32>
    %27 = vector.shape_cast %26 : vector<1x8x4xf32> to vector<8x4xf32>
    %28 = vector.shape_cast %25 : vector<8x4xf32> to vector<1x8x4xf32>
    tpu.vector_store %arg5[%c0_25, %c0_26, %c48], %28 {strides = array<i32>} : memref<1x8x192xf32, #tpu.memory_space<vmem>>, vector<1x8x4xf32>,
    %c0_27 = arith.constant 0 : index
    %c0_28 = arith.constant 0 : index
    %c20 = arith.constant 20 : index
    %29 = vector.load %arg4[%c0_27, %c0_28, %c20] : memref<1x8x64xf32, #tpu.memory_space<vmem>>, vector<1x8x4xf32>
    %30 = vector.shape_cast %29 : vector<1x8x4xf32> to vector<8x4xf32>
    %c0_29 = arith.constant 0 : index
    %c0_30 = arith.constant 0 : index
    %c60 = arith.constant 60 : index
    %31 = vector.load %arg5[%c0_29, %c0_30, %c60] : memref<1x8x192xf32, #tpu.memory_space<vmem>>, vector<1x8x4xf32>
    %32 = vector.shape_cast %31 : vector<1x8x4xf32> to vector<8x4xf32>
    %33 = vector.shape_cast %30 : vector<8x4xf32> to vector<1x8x4xf32>
    tpu.vector_store %arg5[%c0_29, %c0_30, %c60], %33 {strides = array<i32>} : memref<1x8x192xf32, #tpu.memory_space<vmem>>, vector<1x8x4xf32>,
    %c0_31 = arith.constant 0 : index
    %c0_32 = arith.constant 0 : index
    %c24_33 = arith.constant 24 : index
    %34 = vector.load %arg4[%c0_31, %c0_32, %c24_33] : memref<1x8x64xf32, #tpu.memory_space<vmem>>, vector<1x8x4xf32>
    %35 = vector.shape_cast %34 : vector<1x8x4xf32> to vector<8x4xf32>
    %c0_34 = arith.constant 0 : index
    %c0_35 = arith.constant 0 : index
    %c72 = arith.constant 72 : index
    %36 = vector.load %arg5[%c0_34, %c0_35, %c72] : memref<1x8x192xf32, #tpu.memory_space<vmem>>, vector<1x8x4xf32>
    %37 = vector.shape_cast %36 : vector<1x8x4xf32> to vector<8x4xf32>
    %38 = vector.shape_cast %35 : vector<8x4xf32> to vector<1x8x4xf32>
    tpu.vector_store %arg5[%c0_34, %c0_35, %c72], %38 {strides = array<i32>} : memref<1x8x192xf32, #tpu.memory_space<vmem>>, vector<1x8x4xf32>,
    %c0_36 = arith.constant 0 : index
    %c0_37 = arith.constant 0 : index
    %c28 = arith.constant 28 : index
    %39 = vector.load %arg4[%c0_36, %c0_37, %c28] : memref<1x8x64xf32, #tpu.memory_space<vmem>>, vector<1x8x4xf32>
    %40 = vector.shape_cast %39 : vector<1x8x4xf32> to vector<8x4xf32>
    %c0_38 = arith.constant 0 : index
    %c0_39 = arith.constant 0 : index
    %c84 = arith.constant 84 : index
    %41 = vector.load %arg5[%c0_38, %c0_39, %c84] : memref<1x8x192xf32, #tpu.memory_space<vmem>>, vector<1x8x4xf32>
    %42 = vector.shape_cast %41 : vector<1x8x4xf32> to vector<8x4xf32>
    %43 = vector.shape_cast %40 : vector<8x4xf32> to vector<1x8x4xf32>
    tpu.vector_store %arg5[%c0_38, %c0_39, %c84], %43 {strides = array<i32>} : memref<1x8x192xf32, #tpu.memory_space<vmem>>, vector<1x8x4xf32>,
    %c0_40 = arith.constant 0 : index
    %c0_41 = arith.constant 0 : index
    %c32 = arith.constant 32 : index
    %44 = vector.load %arg4[%c0_40, %c0_41, %c32] : memref<1x8x64xf32, #tpu.memory_space<vmem>>, vector<1x8x4xf32>
    %45 = vector.shape_cast %44 : vector<1x8x4xf32> to vector<8x4xf32>
    %c0_42 = arith.constant 0 : index
    %c0_43 = arith.constant 0 : index
    %c96 = arith.constant 96 : index
    %46 = vector.load %arg5[%c0_42, %c0_43, %c96] : memref<1x8x192xf32, #tpu.memory_space<vmem>>, vector<1x8x4xf32>
    %47 = vector.shape_cast %46 : vector<1x8x4xf32> to vector<8x4xf32>
    %48 = vector.shape_cast %45 : vector<8x4xf32> to vector<1x8x4xf32>
    tpu.vector_store %arg5[%c0_42, %c0_43, %c96], %48 {strides = array<i32>} : memref<1x8x192xf32, #tpu.memory_space<vmem>>, vector<1x8x4xf32>,
    %c0_44 = arith.constant 0 : index
    %c0_45 = arith.constant 0 : index
    %c36_46 = arith.constant 36 : index
    %49 = vector.load %arg4[%c0_44, %c0_45, %c36_46] : memref<1x8x64xf32, #tpu.memory_space<vmem>>, vector<1x8x4xf32>
    %50 = vector.shape_cast %49 : vector<1x8x4xf32> to vector<8x4xf32>
    %c0_47 = arith.constant 0 : index
    %c0_48 = arith.constant 0 : index
    %c108 = arith.constant 108 : index
    %51 = vector.load %arg5[%c0_47, %c0_48, %c108] : memref<1x8x192xf32, #tpu.memory_space<vmem>>, vector<1x8x4xf32>
    %52 = vector.shape_cast %51 : vector<1x8x4xf32> to vector<8x4xf32>
    %53 = vector.shape_cast %50 : vector<8x4xf32> to vector<1x8x4xf32>
    tpu.vector_store %arg5[%c0_47, %c0_48, %c108], %53 {strides = array<i32>} : memref<1x8x192xf32, #tpu.memory_space<vmem>>, vector<1x8x4xf32>,
    %c0_49 = arith.constant 0 : index
    %c0_50 = arith.constant 0 : index
    %c40 = arith.constant 40 : index
    %54 = vector.load %arg4[%c0_49, %c0_50, %c40] : memref<1x8x64xf32, #tpu.memory_space<vmem>>, vector<1x8x4xf32>
    %55 = vector.shape_cast %54 : vector<1x8x4xf32> to vector<8x4xf32>
    %c0_51 = arith.constant 0 : index
    %c0_52 = arith.constant 0 : index
    %c120 = arith.constant 120 : index
    %56 = vector.load %arg5[%c0_51, %c0_52, %c120] : memref<1x8x192xf32, #tpu.memory_space<vmem>>, vector<1x8x4xf32>
    %57 = vector.shape_cast %56 : vector<1x8x4xf32> to vector<8x4xf32>
    %58 = vector.shape_cast %55 : vector<8x4xf32> to vector<1x8x4xf32>
    tpu.vector_store %arg5[%c0_51, %c0_52, %c120], %58 {strides = array<i32>} : memref<1x8x192xf32, #tpu.memory_space<vmem>>, vector<1x8x4xf32>,
    %c0_53 = arith.constant 0 : index
    %c0_54 = arith.constant 0 : index
    %c44 = arith.constant 44 : index
    %59 = vector.load %arg4[%c0_53, %c0_54, %c44] : memref<1x8x64xf32, #tpu.memory_space<vmem>>, vector<1x8x4xf32>
    %60 = vector.shape_cast %59 : vector<1x8x4xf32> to vector<8x4xf32>
    %c0_55 = arith.constant 0 : index
    %c0_56 = arith.constant 0 : index
    %c132 = arith.constant 132 : index
    %61 = vector.load %arg5[%c0_55, %c0_56, %c132] : memref<1x8x192xf32, #tpu.memory_space<vmem>>, vector<1x8x4xf32>
    %62 = vector.shape_cast %61 : vector<1x8x4xf32> to vector<8x4xf32>
    %63 = vector.shape_cast %60 : vector<8x4xf32> to vector<1x8x4xf32>
    tpu.vector_store %arg5[%c0_55, %c0_56, %c132], %63 {strides = array<i32>} : memref<1x8x192xf32, #tpu.memory_space<vmem>>, vector<1x8x4xf32>,
    %c0_57 = arith.constant 0 : index
    %c0_58 = arith.constant 0 : index
    %c48_59 = arith.constant 48 : index
    %64 = vector.load %arg4[%c0_57, %c0_58, %c48_59] : memref<1x8x64xf32, #tpu.memory_space<vmem>>, vector<1x8x4xf32>
    %65 = vector.shape_cast %64 : vector<1x8x4xf32> to vector<8x4xf32>
    %c0_60 = arith.constant 0 : index
    %c0_61 = arith.constant 0 : index
    %c144 = arith.constant 144 : index
    %66 = vector.load %arg5[%c0_60, %c0_61, %c144] : memref<1x8x192xf32, #tpu.memory_space<vmem>>, vector<1x8x4xf32>
    %67 = vector.shape_cast %66 : vector<1x8x4xf32> to vector<8x4xf32>
    %68 = vector.shape_cast %65 : vector<8x4xf32> to vector<1x8x4xf32>
    tpu.vector_store %arg5[%c0_60, %c0_61, %c144], %68 {strides = array<i32>} : memref<1x8x192xf32, #tpu.memory_space<vmem>>, vector<1x8x4xf32>,
    %c0_62 = arith.constant 0 : index
    %c0_63 = arith.constant 0 : index
    %c52 = arith.constant 52 : index
    %69 = vector.load %arg4[%c0_62, %c0_63, %c52] : memref<1x8x64xf32, #tpu.memory_space<vmem>>, vector<1x8x4xf32>
    %70 = vector.shape_cast %69 : vector<1x8x4xf32> to vector<8x4xf32>
    %c0_64 = arith.constant 0 : index
    %c0_65 = arith.constant 0 : index
    %c156 = arith.constant 156 : index
    %71 = vector.load %arg5[%c0_64, %c0_65, %c156] : memref<1x8x192xf32, #tpu.memory_space<vmem>>, vector<1x8x4xf32>
    %72 = vector.shape_cast %71 : vector<1x8x4xf32> to vector<8x4xf32>
    %73 = vector.shape_cast %70 : vector<8x4xf32> to vector<1x8x4xf32>
    tpu.vector_store %arg5[%c0_64, %c0_65, %c156], %73 {strides = array<i32>} : memref<1x8x192xf32, #tpu.memory_space<vmem>>, vector<1x8x4xf32>,
    %c0_66 = arith.constant 0 : index
    %c0_67 = arith.constant 0 : index
    %c56 = arith.constant 56 : index
    %74 = vector.load %arg4[%c0_66, %c0_67, %c56] : memref<1x8x64xf32, #tpu.memory_space<vmem>>, vector<1x8x4xf32>
    %75 = vector.shape_cast %74 : vector<1x8x4xf32> to vector<8x4xf32>
    %c0_68 = arith.constant 0 : index
    %c0_69 = arith.constant 0 : index
    %c168 = arith.constant 168 : index
    %76 = vector.load %arg5[%c0_68, %c0_69, %c168] : memref<1x8x192xf32, #tpu.memory_space<vmem>>, vector<1x8x4xf32>
    %77 = vector.shape_cast %76 : vector<1x8x4xf32> to vector<8x4xf32>
    %78 = vector.shape_cast %75 : vector<8x4xf32> to vector<1x8x4xf32>
    tpu.vector_store %arg5[%c0_68, %c0_69, %c168], %78 {strides = array<i32>} : memref<1x8x192xf32, #tpu.memory_space<vmem>>, vector<1x8x4xf32>,
    %c0_70 = arith.constant 0 : index
    %c0_71 = arith.constant 0 : index
    %c60_72 = arith.constant 60 : index
    %79 = vector.load %arg4[%c0_70, %c0_71, %c60_72] : memref<1x8x64xf32, #tpu.memory_space<vmem>>, vector<1x8x4xf32>
    %80 = vector.shape_cast %79 : vector<1x8x4xf32> to vector<8x4xf32>
    %c0_73 = arith.constant 0 : index
    %c0_74 = arith.constant 0 : index
    %c180 = arith.constant 180 : index
    %81 = vector.load %arg5[%c0_73, %c0_74, %c180] : memref<1x8x192xf32, #tpu.memory_space<vmem>>, vector<1x8x4xf32>
    %82 = vector.shape_cast %81 : vector<1x8x4xf32> to vector<8x4xf32>
    %83 = vector.shape_cast %80 : vector<8x4xf32> to vector<1x8x4xf32>
    tpu.vector_store %arg5[%c0_73, %c0_74, %c180], %83 {strides = array<i32>} : memref<1x8x192xf32, #tpu.memory_space<vmem>>, vector<1x8x4xf32>,
    return
  }
  func.func @transform_0(%arg0: i32, %arg1: i32, %arg2: i32) -> (i32, i32) {
    %c0_i32 = arith.constant 0 : i32
    %c0_i32_0 = arith.constant 0 : i32
    return %arg1, %c0_i32 : i32, i32
  }
  func.func @transform_1(%arg0: i32, %arg1: i32, %arg2: i32) -> (i32, i32, i32) {
    %c0_i32 = arith.constant 0 : i32
    return %arg0, %arg1, %arg2 : i32, i32, i32
  }
  func.func @transform_2(%arg0: i32, %arg1: i32, %arg2: i32) -> (i32, i32, i32) {
    %c0_i32 = arith.constant 0 : i32
    return %arg0, %arg1, %arg2 : i32, i32, i32
  }
}

</mosaic_0001>

<llo_original>
// kernel: tpu_custom_call.1
$region0: #{tpu_custom_call.1}
  #allocation0 [shape = 'u32[]', space=smem, size = 0x4, offset = 0x4, fixed_abs, tag = 'smem constant byte address 0x4 - core index']
  #allocation1 [shape = 'u32[144,128]{1,0:T(1,128)}', space=vmem, size = 0x12000, scoped, tag = 'internal scratch']
  %s0 = inlined_call_operand.hbm [shape: f32[16,192], index: 0, kind: input, shape index: {}]
  %s1 = inlined_call_operand.hbm [shape: f32[2,16,64], index: 1, kind: input, shape index: {}]
  %s2 = inlined_call_operand.hbm [shape: f32[2,16,192], index: 2, kind: output, shape index: {}]
  %s3 = sld [smem:[#allocation0]]
  $region49: #{tpu_custom_call.1} parent=0
    _
  %s5 = ssub.s32 1, %s3
  %s6 = scalar_select 0, %s5, %s3
  $region1: #{tpu_custom_call.1} parent=0
    #allocation2 [shape = 'u8[16384]{0}', space=vmem, size = 0x4000, scoped, tag = 'input window, operand 0']
    #allocation3 [shape = 's32[2]{0}', space=sflag, size = 0x8, scoped, tag = 'scoped memory for tpu_custom_call.1']
    #allocation4 [shape = 's32[2]{0}', space=sflag, size = 0x8, scoped, tag = 'scoped memory for tpu_custom_call.1']
    #allocation5 [shape = 'u8[8192]{0}', space=vmem, size = 0x2000, scoped, tag = 'input window, operand 1']
    #allocation6 [shape = 's32[2]{0}', space=sflag, size = 0x8, scoped, tag = 'scoped memory for tpu_custom_call.1']
    #allocation7 [shape = 'u8[16384]{0}', space=vmem, size = 0x4000, scoped, tag = 'output window, operand 0']
    %7 = vsyncpa [#allocation3], 0
    %s8 = scalar_lea.sflag [#allocation3], 1
    %9 = vsyncpa %s8, 0
    %10 = vsyncpa [#allocation6], 0
    %s11 = scalar_lea.sflag [#allocation6], 1
    %12 = vsyncpa %s11, 0
    %13 = vsyncpa [#allocation4], 0
    %s14 = scalar_lea.sflag [#allocation4], 1
    %15 = vsyncpa %s14, 0
    loop: start=0, step=1, limit=6
    $region2: #{tpu_custom_call.1} parent=1 // loop_pre_header
      _
    $region3: #{tpu_custom_call.1} parent=1 // loop_header
      %s17 = sphi 0, %s21
      %p18 = scmp.ge.s32.totalorder %s17, 6
      %s24 = sphi 0, %s43
      %s25 = sphi 0, %s39
      %s26 = sphi 0, %s35
      %s27 = sphi 0, %s24
      %s28 = sphi 0, %s25
      %s29 = sphi 0, %s26
      %s30 = sphi 0, %s27
      %s31 = sphi 0, %s28
      %s32 = sphi 0, %s29
      %s46 = sphi 0, %s48
      %s49 = sphi 0, %s46
      %s50 = sphi 0, %s49
      %s66 = sphi 0, %s50
      %s76 = sphi 0, %s78
      %s79 = sphi 0, %s76
      %s80 = sphi 0, %s79
      %s96 = sphi 0, %s80
      %s106 = sphi 0, %s108
      %s109 = sphi 0, %s106
      %s110 = sphi 0, %s109
      %s126 = sphi 0, %s110
    $region4: #{tpu_custom_call.1} parent=1 // loop_header_branch
      %20 = sbr.rel (%p18) target = $region8
    $region5: #{tpu_custom_call.1} parent=1 // loop_body
      %s22 = ssub.s32 %s17, 1
      %s23 = ssub.s32 %s17, 2
      %s33 = sadd.s32 1, %s26
      %p34 = scmp.ge.s32.totalorder %s33, 1
      %s35 = scalar_select %p34, 0, %s33
      %s36 = sadd.s32 1, %s25
      %s37 = scalar_select %p34, %s36, %s25
      %p38 = scmp.ge.s32.totalorder %s37, 2
      %s39 = scalar_select %p38, 0, %s37
      %s40 = sadd.s32 1, %s24
      %s41 = scalar_select %p38, %s40, %s24
      %p42 = scmp.ge.s32.totalorder %s41, 2
      %s43 = scalar_select %p42, 0, %s41
      %s44 = ssub.s32 %s25, %s39
      %p45 = scmp.eq.s32.totalorder %s44, 0
      %s47 = sadd.s32 %s46, 1
      %s48 = scalar_select %p45, %s46, %s47
      %p51 = pneg %p45
      %p52 = scmp.eq.s32.totalorder %s17, 3
      %p53 = por %p51, %p52
      %p54 = scmp.ne.s32.totalorder %s46, %s49
      %p55 = scmp.eq.s32.totalorder %s17, 0
      %p56 = por %p54, %p55
      %p57 = scmp.ne.s32.totalorder %s46, %s49
      %p58 = scmp.eq.s32.totalorder %s22, 3
      %p59 = por %p57, %p58
      %p60 = scmp.ne.s32.totalorder %s49, %s50
      %p61 = scmp.eq.s32.totalorder %s22, 0
      %p62 = por %p60, %p61
      %p63 = scmp.ne.s32.totalorder %s49, %s50
      %p64 = scmp.eq.s32.totalorder %s23, 3
      %p65 = por %p63, %p64
      %p67 = scmp.ne.s32.totalorder %s50, %s66
      %p68 = scmp.eq.s32.totalorder %s23, 0
      %p69 = por %p67, %p68
      %s70 = ssub.s32 %s24, %s43
      %s71 = ssub.s32 %s25, %s39
      %s72 = sor.u32 %s70, %s71
      %s73 = ssub.s32 %s26, %s35
      %s74 = sor.u32 %s72, %s73
      %p75 = scmp.eq.s32.totalorder %s74, 0
      %s77 = sadd.s32 %s76, 1
      %s78 = scalar_select %p75, %s76, %s77
      %p81 = pneg %p75
      %p82 = scmp.eq.s32.totalorder %s17, 3
      %p83 = por %p81, %p82
      %p84 = scmp.ne.s32.totalorder %s76, %s79
      %p85 = scmp.eq.s32.totalorder %s17, 0
      %p86 = por %p84, %p85
      %p87 = scmp.ne.s32.totalorder %s76, %s79
      %p88 = scmp.eq.s32.totalorder %s22, 3
      %p89 = por %p87, %p88
      %p90 = scmp.ne.s32.totalorder %s79, %s80
      %p91 = scmp.eq.s32.totalorder %s22, 0
      %p92 = por %p90, %p91
      %p93 = scmp.ne.s32.totalorder %s79, %s80
      %p94 = scmp.eq.s32.totalorder %s23, 3
      %p95 = por %p93, %p94
      %p97 = scmp.ne.s32.totalorder %s80, %s96
      %p98 = scmp.eq.s32.totalorder %s23, 0
      %p99 = por %p97, %p98
      %s100 = ssub.s32 %s24, %s43
      %s101 = ssub.s32 %s25, %s39
      %s102 = sor.u32 %s100, %s101
      %s103 = ssub.s32 %s26, %s35
      %s104 = sor.u32 %s102, %s103
      %p105 = scmp.eq.s32.totalorder %s104, 0
      %s107 = sadd.s32 %s106, 1
      %s108 = scalar_select %p105, %s106, %s107
      %p111 = pneg %p105
      %p112 = scmp.eq.s32.totalorder %s17, 3
      %p113 = por %p111, %p112
      %p114 = scmp.ne.s32.totalorder %s106, %s109
      %p115 = scmp.eq.s32.totalorder %s17, 0
      %p116 = por %p114, %p115
      %p117 = scmp.ne.s32.totalorder %s106, %s109
      %p118 = scmp.eq.s32.totalorder %s22, 3
      %p119 = por %p117, %p118
      %p120 = scmp.ne.s32.totalorder %s109, %s110
      %p121 = scmp.eq.s32.totalorder %s22, 0
      %p122 = por %p120, %p121
      %p123 = scmp.ne.s32.totalorder %s109, %s110
      %p124 = scmp.eq.s32.totalorder %s23, 3
      %p125 = por %p123, %p124
      %p127 = scmp.ne.s32.totalorder %s110, %s126
      %p128 = scmp.eq.s32.totalorder %s23, 0
      %p129 = por %p127, %p128
      %p130 = scmp.le.s32.totalorder 1, %s17
      %p131 = scmp.lt.s32.totalorder %s17, 5
      %p132 = pnand %p130, %p131
      %p133 = pneg %p132
      // Predicated region
      $region9: #{tpu_custom_call.1} parent=5 // pred_check
        _
      $region10: #{tpu_custom_call.1} parent=5 // pred_check_branch
        %135 = sbr.rel (%p132) target = $region12
      $region11: #{tpu_custom_call.1} parent=5 // pred_region
        %s136 = ssub.s32 %s17, 1
      $region12: #{tpu_custom_call.1} parent=5 // pred_fallthru
        _
      %p137 = scmp.lt.s32.totalorder %s17, 4
      // Predicated region
      $region13: #{tpu_custom_call.1} parent=5 // pred_check
        %p138 = pneg %p137
      $region14: #{tpu_custom_call.1} parent=5 // pred_check_branch
        %140 = sbr.rel (%p138) target = $region16
      $region15: #{tpu_custom_call.1} parent=5 // pred_region
        // Predicated region
        $region17: #{tpu_custom_call.1} parent=15 // pred_check
          %p141 = pneg %p56
        $region18: #{tpu_custom_call.1} parent=15 // pred_check_branch
          %143 = sbr.rel (%p141) target = $region20
        $region19: #{tpu_custom_call.1} parent=15 // pred_region
          %s144 = sand.u32 %s46, 1
          %s145 = scalar_lea.sflag [#allocation3], %s144
          %s146 = sand.u32 %s46, 1
          %s147 = smul.addr %s146, 16
          %s148 = scalar_lea.vmem [#allocation2], %s147
          %s150 = ssub.s32 256, 256
          %151 = vsyncadd %s145, %s150
          %s152 = smul.addr %s25, 2
          %s153 = smul.addr %s152, 128
          %s154 = scalar_lea.hbm %s0, %s153
          %s156 = sshll.u32 %s148, 4
          %s157 = int_to_ptr.vmem [resolvable:$true] %s156
          %159 = dma.hbm_to_vmem [thread:$0]  %s154, 256, %s157, %s145
        $region20: #{tpu_custom_call.1} parent=15 // pred_fallthru
          _
        // Predicated region
        $region21: #{tpu_custom_call.1} parent=15 // pred_check
          %p160 = pneg %p86
        $region22: #{tpu_custom_call.1} parent=15 // pred_check_branch
          %162 = sbr.rel (%p160) target = $region24
        $region23: #{tpu_custom_call.1} parent=15 // pred_region
          %s163 = sand.u32 %s76, 1
          %s164 = scalar_lea.sflag [#allocation6], %s163
          %s165 = sand.u32 %s76, 1
          %s166 = smul.addr %s165, 8
          %s167 = scalar_lea.vmem [#allocation5], %s166
          %s169 = ssub.s32 128, 128
          %170 = vsyncadd %s164, %s169
          %s171 = sadd.s32 %s26, %s25
          %s172 = smul.addr %s24, 2
          %s173 = sadd.s32 %s171, %s172
          %s174 = smul.addr %s173, 128
          %s175 = scalar_lea.hbm %s1, %s174
          %s177 = sshll.u32 %s167, 4
          %s178 = int_to_ptr.vmem [resolvable:$true] %s177
          %180 = dma.hbm_to_vmem [thread:$0]  %s175, 128, %s178, %s164
        $region24: #{tpu_custom_call.1} parent=15 // pred_fallthru
          _
      $region16: #{tpu_custom_call.1} parent=5 // pred_fallthru
        _
      %p181 = scmp.le.s32.totalorder 1, %s17
      %p182 = scmp.lt.s32.totalorder %s17, 5
      %p183 = pnand %p181, %p182
      %p184 = pneg %p183
      // Predicated region
      $region25: #{tpu_custom_call.1} parent=5 // pred_check
        _
      $region26: #{tpu_custom_call.1} parent=5 // pred_check_branch
        %186 = sbr.rel (%p183) target = $region28
      $region27: #{tpu_custom_call.1} parent=5 // pred_region
        %s187 = ssub.s32 %s17, 1
        %s188 = sand.u32 %s49, 1
        %s189 = scalar_lea.sflag [#allocation3], %s188
        %s190 = sand.u32 %s49, 1
        %s191 = smul.addr %s190, 16
        %s192 = scalar_lea.vmem [#allocation2], %s191
        // Predicated region
        $region29: #{tpu_custom_call.1} parent=27 // pred_check
          %p193 = pneg %p62
        $region30: #{tpu_custom_call.1} parent=27 // pred_check_branch
          %195 = sbr.rel (%p193) target = $region32
        $region31: #{tpu_custom_call.1} parent=27 // pred_region
          %196 = dma.done %s189, 256
        $region32: #{tpu_custom_call.1} parent=27 // pred_fallthru
          _
        %s197 = sand.u32 %s79, 1
        %s198 = scalar_lea.sflag [#allocation6], %s197
        %s199 = sand.u32 %s79, 1
        %s200 = smul.addr %s199, 8
        %s201 = scalar_lea.vmem [#allocation5], %s200
        // Predicated region
        $region33: #{tpu_custom_call.1} parent=27 // pred_check
          %p202 = pneg %p92
        $region34: #{tpu_custom_call.1} parent=27 // pred_check_branch
          %204 = sbr.rel (%p202) target = $region36
        $region35: #{tpu_custom_call.1} parent=27 // pred_region
          %205 = dma.done %s198, 128
        $region36: #{tpu_custom_call.1} parent=27 // pred_fallthru
          _
        %s206 = sand.u32 %s49, 1
        %s207 = scalar_lea.sflag [#allocation3], %s206
        %s208 = sand.u32 %s49, 1
        %s209 = smul.addr %s208, 16
        %s210 = scalar_lea.vmem [#allocation2], %s209
        %p211 = pneg %p62
        %p212 = pneg %p59
        %s213 = sand.u32 %s79, 1
        %s214 = scalar_lea.sflag [#allocation6], %s213
        %s215 = sand.u32 %s79, 1
        %s216 = smul.addr %s215, 8
        %s217 = scalar_lea.vmem [#allocation5], %s216
        %p218 = pneg %p92
        %p219 = pneg %p89
        %p220 = pneg %p122
        %p221 = pneg %p119
        %s222 = sand.u32 %s109, 1
        %s223 = scalar_lea.sflag [#allocation4], %s222
        %s224 = sand.u32 %s109, 1
        %s225 = smul.addr %s224, 16
        %s226 = scalar_lea.vmem [#allocation7], %s225
        %s227 = smul.u32 2, %s29
        %v228 = vld [vmem:[%s192] sm:$0xff]
        %v229 = vld [vmem:[%s192 + $0x8] sm:$0xff]
        %230 = vst [vmem:[%s226] sm:$0xff] %v228
        %vm231 = vcmask 523264
        %232 = vst.msk [vmem:[%s226 + $0x8] sm:$0xff] %vm231, %v229
        %v233 = vld [vmem:[%s201] sm:$0xff]
        %vm234 = vcmask 31744
        %235 = vst.msk [vmem:[%s226] sm:$0xff] %vm234, %v233
        %v236 = vld [vmem:[%s201] sm:$0xff]
        %238 = vrot.lane.b32.xlu0 %v236, 8
        %v239 = vpop.permute.xlu0 %238
        %vm241 = vcmask 130144
        %242 = vst.msk [vmem:[%s226] sm:$0xff] %vm241, %v239
        %v243 = vld [vmem:[%s201] sm:$0xff]
        %245 = vrot.lane.b32.xlu0 %v243, 16
        %v246 = vpop.permute.xlu0 %245
        %vm248 = vcmask 228544
        %249 = vst.msk [vmem:[%s226] sm:$0xff] %vm248, %v246
        %v250 = vld [vmem:[%s201] sm:$0xff]
        %252 = vrot.lane.b32.xlu0 %v250, 24
        %v253 = vpop.permute.xlu0 %252
        %vm255 = vcmask 326944
        %256 = vst.msk [vmem:[%s226] sm:$0xff] %vm255, %v253
        %v257 = vld [vmem:[%s201] sm:$0xff]
        %259 = vrot.lane.b32.xlu0 %v257, 32
        %v260 = vpop.permute.xlu0 %259
        %vm262 = vcmask 425344
        %263 = vst.msk [vmem:[%s226] sm:$0xff] %vm262, %v260
        %v264 = vld [vmem:[%s201] sm:$0xff]
        %266 = vrot.lane.b32.xlu0 %v264, 40
        %v267 = vpop.permute.xlu0 %266
        %vm269 = vcmask 523744
        %270 = vst.msk [vmem:[%s226] sm:$0xff] %vm269, %v267
        %v271 = vld [vmem:[%s201] sm:$0xff]
        %273 = vrot.lane.b32.xlu0 %v271, 48
        %v274 = vpop.permute.xlu0 %273
        %vm276 = vcmask 622144
        %277 = vst.msk [vmem:[%s226] sm:$0xff] %vm276, %v274
        %v278 = vld [vmem:[%s201] sm:$0xff]
        %280 = vrot.lane.b32.xlu0 %v278, 56
        %v281 = vpop.permute.xlu0 %280
        %vm283 = vcmask 720544
        %284 = vst.msk [vmem:[%s226] sm:$0xff] %vm283, %v281
        %v285 = vld [vmem:[%s201] sm:$0xff]
        %287 = vrot.lane.b32.xlu0 %v285, 64
        %v288 = vpop.permute.xlu0 %287
        %vm290 = vcmask 818944
        %291 = vst.msk [vmem:[%s226] sm:$0xff] %vm290, %v288
        %v292 = vld [vmem:[%s201] sm:$0xff]
        %294 = vrot.lane.b32.xlu0 %v292, 72
        %v295 = vpop.permute.xlu0 %294
        %vm297 = vcmask 917344
        %298 = vst.msk [vmem:[%s226] sm:$0xff] %vm297, %v295
        %v299 = vld [vmem:[%s201] sm:$0xff]
        %301 = vrot.lane.b32.xlu0 %v299, 80
        %v302 = vpop.permute.xlu0 %301
        %vm304 = vcmask 1015744
        %305 = vst.msk [vmem:[%s226] sm:$0xff] %vm304, %v302
        %v306 = vld [vmem:[%s201] sm:$0xff]
        %308 = vrot.lane.b32.xlu0 %v306, 88
        %v309 = vpop.permute.xlu0 %308
        %vm311 = vcmask 64544
        %312 = vst.msk [vmem:[%s226 + $0x8] sm:$0xff] %vm311, %v309
        %v313 = vld [vmem:[%s201] sm:$0xff]
        %315 = vrot.lane.b32.xlu0 %v313, 96
        %v316 = vpop.permute.xlu0 %315
        %vm318 = vcmask 162944
        %319 = vst.msk [vmem:[%s226 + $0x8] sm:$0xff] %vm318, %v316
        %v320 = vld [vmem:[%s201] sm:$0xff]
        %322 = vrot.lane.b32.xlu0 %v320, 104
        %v323 = vpop.permute.xlu0 %322
        %vm325 = vcmask 261344
        %326 = vst.msk [vmem:[%s226 + $0x8] sm:$0xff] %vm325, %v323
        %v327 = vld [vmem:[%s201] sm:$0xff]
        %329 = vrot.lane.b32.xlu0 %v327, 112
        %v330 = vpop.permute.xlu0 %329
        %vm332 = vcmask 359744
        %333 = vst.msk [vmem:[%s226 + $0x8] sm:$0xff] %vm332, %v330
        %v334 = vld [vmem:[%s201] sm:$0xff]
        %336 = vrot.lane.b32.xlu0 %v334, 120
        %v337 = vpop.permute.xlu0 %336
        %vm339 = vcmask 458144
        %340 = vst.msk [vmem:[%s226 + $0x8] sm:$0xff] %vm339, %v337
        %s341 = sand.u32 %s109, 1
        %s342 = scalar_lea.sflag [#allocation4], %s341
        %s343 = sand.u32 %s109, 1
        %s344 = smul.addr %s343, 16
        %s345 = scalar_lea.vmem [#allocation7], %s344
        // Predicated region
        $region37: #{tpu_custom_call.1} parent=27 // pred_check
          %p346 = pneg %p119
        $region38: #{tpu_custom_call.1} parent=27 // pred_check_branch
          %348 = sbr.rel (%p346) target = $region40
        $region39: #{tpu_custom_call.1} parent=27 // pred_region
          %s349 = smul.u32 2, %s29
          %s351 = ssub.s32 256, 256
          %352 = vsyncadd %s342, %s351
          %s353 = smul.addr %s28, 2
          %s354 = sadd.s32 %s349, %s353
          %s355 = smul.addr %s27, 4
          %s356 = sadd.s32 %s354, %s355
          %s357 = smul.addr %s356, 128
          %s358 = scalar_lea.hbm %s2, %s357
          %s360 = sshll.u32 %s345, 4
          %s361 = int_to_ptr.vmem [resolvable:$true] %s360
          %363 = dma.vmem_to_hbm [thread:$0]  %s361, 256, %s358, %s342
        $region40: #{tpu_custom_call.1} parent=27 // pred_fallthru
          _
      $region28: #{tpu_custom_call.1} parent=5 // pred_fallthru
        _
      %p364 = scmp.le.s32.totalorder 2, %s17
      // Predicated region
      $region41: #{tpu_custom_call.1} parent=5 // pred_check
        %p365 = pneg %p364
      $region42: #{tpu_custom_call.1} parent=5 // pred_check_branch
        %367 = sbr.rel (%p365) target = $region44
      $region43: #{tpu_custom_call.1} parent=5 // pred_region
        %s368 = ssub.s32 %s17, 2
        // Predicated region
        $region45: #{tpu_custom_call.1} parent=43 // pred_check
          %p369 = pneg %p125
        $region46: #{tpu_custom_call.1} parent=43 // pred_check_branch
          %371 = sbr.rel (%p369) target = $region48
        $region47: #{tpu_custom_call.1} parent=43 // pred_region
          %s372 = sand.u32 %s110, 1
          %s373 = scalar_lea.sflag [#allocation4], %s372
          %s374 = sand.u32 %s110, 1
          %s375 = smul.addr %s374, 16
          %s376 = scalar_lea.vmem [#allocation7], %s375
          %377 = dma.done %s373, 256
        $region48: #{tpu_custom_call.1} parent=43 // pred_fallthru
          _
      $region44: #{tpu_custom_call.1} parent=5 // pred_fallthru
        _
    $region6: #{tpu_custom_call.1} parent=1 // loop_footer
      %s21 = sadd.s32 1, %s17
    $region7: #{tpu_custom_call.1} parent=1 // loop_footer_branch
      %16 = sbr.rel target = $region3
    $region8: #{tpu_custom_call.1} parent=1 // loop_exit
      _
    %378 = vsyncpa [#allocation3], 1
    %s379 = scalar_lea.sflag [#allocation3], 1
    %380 = vsyncpa %s379, 1
    %381 = vsyncpa [#allocation6], 1
    %s382 = scalar_lea.sflag [#allocation6], 1
    %383 = vsyncpa %s382, 1
    %384 = vsyncpa [#allocation4], 1
    %s385 = scalar_lea.sflag [#allocation4], 1
    %386 = vsyncpa %s385, 1

</llo_original>
